<compile_context>
chip_gen: v7x
topology: tpu7x:2x2x1
jax: 0.10.0
libtpu: 0.0.40
codegen_flags: <defaults>
</compile_context>

<pallas_src>
import jax
import jax.numpy as jnp
from jax import lax
from jax.experimental import pallas as pl
from jax.experimental.pallas import tpu as pltpu

KERNEL_SIZE = 3

_LANE = 128
_SUBLANE = 8


def _round_up(x, m):
    return (x + m - 1) // m * m


def _tensorcores_per_chip():
    """Best-effort TensorCores-per-chip detection (2 on v4/v5p megacore and v7x)."""
    try:
        kind = jax.devices()[0].device_kind.lower()
    except Exception:
        return 1
    return 2 if any(tag in kind for tag in ("v4", "v5p", "7x", "v7")) else 1


def _block_vmem_bytes(N, Kc, Cout, THW, in_itemsize, out_itemsize):
    """Lane/sublane-padded VMEM bytes of one grid step's blocks (x2 buffers)."""
    sub_in = _SUBLANE * (4 // in_itemsize)      # bf16 packs 2 rows per sublane
    sub_out = _SUBLANE * (4 // out_itemsize)
    col_blk = N * _round_up(Kc, sub_in) * _round_up(THW, _LANE) * in_itemsize
    out_blk = N * _round_up(Cout, sub_out) * _round_up(THW, _LANE) * out_itemsize
    w_blk = _round_up(Cout, sub_in) * _round_up(Kc, _LANE) * in_itemsize
    return 2 * (col_blk + out_blk + w_blk)      # Pallas double-buffers each operand


def _pick_row_tile(H, W, *, N, Kc, Cout, in_itemsize, out_itemsize,
                   prefer_bands, vmem_budget):
    """Pick row-band height TH with H % TH == 0 and (TH*W) % 128 == 0
    (lane-dense blocks) whose per-step blocks fit `vmem_budget`.  Take the
    largest such TH; on multi-TensorCore chips prefer >= prefer_bands steps."""
    cands = [t for t in range(1, H + 1)
             if H % t == 0 and (t * W) % _LANE == 0
             and _block_vmem_bytes(N, Kc, Cout, t * W,
                                   in_itemsize, out_itemsize) <= vmem_budget]
    if not cands:
        # Fallback: one full-height band.  The block's last dim then equals the
        # full H*W (always a legal block shape); stores may be lane-masked if
        # H*W is not a multiple of 128.
        return H
    if prefer_bands > 1:
        multi = [t for t in cands if H // t >= prefer_bands]
        if multi:
            return max(multi)
    return max(cands)


def _make_conv_kernel(N):
    def conv_kernel(col_ref, w_ref, o_ref):
        # col_ref: (N, K*K*Cin, TH*W)  im2col row band (flattened spatial on lanes)
        # w_ref:   (Cout, K*K*Cin)     resident weights
        # o_ref:   (N, Cout, TH*W)     output band, already in the final layout
        w = w_ref[...]
        # Static unroll over the (small) batch.  Each dot is
        # (Cout, Kc) @ (Kc, TH*W) -> (Cout, TH*W): channels on sublanes,
        # spatial on lanes -> lane-dense MXU result and unmasked vst, stored
        # straight into the output layout (no transpose, no accumulator adds).
        for n in range(N):
            o_ref[n] = jnp.dot(
                w, col_ref[n], preferred_element_type=jnp.float32
            ).astype(o_ref.dtype)
    return conv_kernel


def conv2d_pallas(x_nchw, w_oihw, *, compute_dtype=None):
    """3x3 same-padding conv, stride 1, no bias.  x: (N,Cin,H,W), w: (Cout,Cin,K,K)."""
    N, Cin, H, W = x_nchw.shape
    Cout, Cin_w, K, K2 = w_oihw.shape
    assert Cin == Cin_w and K == K2 == KERNEL_SIZE
    pad = K // 2
    Kc = K * K * Cin

    cd = jnp.dtype(compute_dtype) if compute_dtype is not None else jnp.dtype(x_nchw.dtype)
    out_dtype = jnp.dtype(x_nchw.dtype)

    prefer_bands = _tensorcores_per_chip()
    vmem_budget = 40 << 20  # per-step block budget; conservative even on v7x
    TH = _pick_row_tile(H, W, N=N, Kc=Kc, Cout=Cout,
                        in_itemsize=cd.itemsize, out_itemsize=out_dtype.itemsize,
                        prefer_bands=prefer_bands, vmem_budget=vmem_budget)
    n_bands = H // TH
    THW = TH * W

    # ---- Wrapper-side (XLA) im2col: keeps all shuffle/concat work off the
    # kernel's VPU/XLU slots.  NCHW is kept throughout -> no layout transpose.
    # bf16-resident slab when compute_dtype=bf16 (halves HBM/VMEM traffic).
    x_c = x_nchw.astype(cd)
    x_pad = jnp.pad(x_c, ((0, 0), (0, 0), (pad, pad), (pad, pad)))
    taps = [x_pad[:, :, dy:dy + H, dx:dx + W]          # (N, Cin, H, W) per tap
            for dy in range(K) for dx in range(K)]
    col = jnp.stack(taps, axis=1).reshape(N, Kc, H * W)  # (N, Kc, H*W)

    # im2col weights, rows ordered (ky, kx, cin) to match the slab.
    w_col = jnp.transpose(w_oihw, (0, 2, 3, 1)).reshape(Cout, Kc).astype(cd)

    # VMEM limit from the actual padded block footprints (+ headroom), capped
    # at 48 MiB (safe on v5e/v6e's 128 MiB and below v7x's 64 MiB physical).
    # TODO(synk): on 128-MiB parts this could rise to ~100 MiB for very large
    # spatial sizes / TH.
    needed = _block_vmem_bytes(N, Kc, Cout, THW, cd.itemsize, out_dtype.itemsize)
    vmem_limit = int(min(max(2 * needed + (8 << 20), 32 << 20), 48 << 20))

    cost = pl.CostEstimate(
        flops=2 * N * H * W * Kc * Cout,
        transcendentals=0,
        bytes_accessed=(col.size * cd.itemsize + w_col.size * cd.itemsize
                        + N * Cout * H * W * out_dtype.itemsize))

    out_flat = pl.pallas_call(
        _make_conv_kernel(N),
        out_shape=jax.ShapeDtypeStruct((N, Cout, H * W), out_dtype),
        grid_spec=pltpu.PrefetchScalarGridSpec(
            num_scalar_prefetch=0,
            grid=(n_bands,),
            in_specs=[
                # Per-band im2col slab: streamed (double-buffered) per step.
                pl.BlockSpec((N, Kc, THW), lambda i: (0, 0, i)),
                # Weights: constant index_map -> DMA'd once, resident (~4 KiB).
                pl.BlockSpec((Cout, Kc), lambda i: (0, 0)),
            ],
            out_specs=pl.BlockSpec((N, Cout, THW), lambda i: (0, 0, i)),
        ),
        compiler_params=pltpu.CompilerParams(
            # TODO(synk): on v7x, confirm in the trace that the bands shard
            # across both TensorCores; otherwise try pltpu.CORE_PARALLEL.
            dimension_semantics=("parallel",),
            vmem_limit_bytes=vmem_limit),
        cost_estimate=cost,
    )(col, w_col)

    return out_flat.reshape(N, Cout, H, W)   # free reshape, already NCHW order


# TODO(synk): BatchNorm2d path (bn=True) not implemented; module default is bn=False.


if __name__ == "__main__":
    key = jax.random.PRNGKey(0)
    kx, kw = jax.random.split(key)

    N, Cin, Cout, H, W = 2, 4, 8, 16, 16
    x = jax.random.normal(kx, (N, Cin, H, W), dtype=jnp.float32)
    # Deterministic weight init (shape matches nn.Conv2d(Cin, Cout, 3).weight)
    fan_in = Cin * KERNEL_SIZE * KERNEL_SIZE
    bound = 1.0 / (fan_in ** 0.5)
    w = jax.random.uniform(kw, (Cout, Cin, KERNEL_SIZE, KERNEL_SIZE),
                           dtype=jnp.float32, minval=-bound, maxval=bound)

    # Reference semantics of nn.Conv2d (SAME padding, stride 1, no bias).
    ref = lax.conv_general_dilated(
        x, w, window_strides=(1, 1), padding="SAME",
        dimension_numbers=("NCHW", "OIHW", "NCHW"))

    # Default path: f32 operands, f32 accumulation (exact module semantics).
    out = jax.block_until_ready(conv2d_pallas(x, w))
    assert out.shape == (N, Cout, H, W)
    assert jnp.allclose(out, ref, atol=1e-4, rtol=1e-4)

    # bf16-resident path (v6e/v7x perf feedback); f32 accumulation, so only the
    # allclose tolerance changes (input rounding, not a kernel bug).
    out_bf16 = jax.block_until_ready(conv2d_pallas(x, w, compute_dtype=jnp.bfloat16))
    assert jnp.allclose(out_bf16, ref, atol=5e-2, rtol=5e-2)

    print("KERNEL_OK")
</pallas_src>

<mosaic_0001>
module attributes {stable_mosaic.version = 11 : i64} {
  func.func @conv_kernel(%arg0: i32, %arg1: memref<2x36x256xf32, #tpu.memory_space<vmem>>, %arg2: memref<8x36xf32, #tpu.memory_space<vmem>>, %arg3: memref<2x8x256xf32, #tpu.memory_space<vmem>>) attributes {dimension_semantics = [#tpu.dimension_semantics<parallel>], iteration_bounds = array<i64: 1>, scalar_prefetch = 0 : i64, scratch_operands = 0 : i64, tpu.core_type = #tpu.core_type<tc>, window_params = [{transform_indices = @transform_0, window_bounds = array<i64: 2, 36, 256>}, {pipeline_mode = #tpu.pipeline_mode<synchronous>, transform_indices = @transform_1, window_bounds = array<i64: 8, 36>}, {transform_indices = @transform_2, window_bounds = array<i64: 2, 8, 256>}]} {
    %c0 = arith.constant 0 : index
    %c0_0 = arith.constant 0 : index
    %0 = vector.load %arg2[%c0, %c0_0] : memref<8x36xf32, #tpu.memory_space<vmem>>, vector<8x36xf32>
    %c0_1 = arith.constant 0 : index
    %c0_2 = arith.constant 0 : index
    %c0_3 = arith.constant 0 : index
    %1 = vector.load %arg1[%c0_1, %c0_2, %c0_3] : memref<2x36x256xf32, #tpu.memory_space<vmem>>, vector<1x36x256xf32>
    %2 = vector.shape_cast %1 : vector<1x36x256xf32> to vector<36x256xf32>
    %cst = arith.constant dense<0.000000e+00> : vector<8x256xf32>
    %3 = tpu.matmul %0, %2, %cst {dimension_numbers = #tpu.dot_dimension_numbers<[1], [0], [0], [1], [0, 0, 1, 1], [], []>} : vector<8x36xf32>, vector<36x256xf32>, vector<8x256xf32> -> vector<8x256xf32>
    %c0_4 = arith.constant 0 : index
    %c0_5 = arith.constant 0 : index
    %c0_6 = arith.constant 0 : index
    %4 = vector.load %arg3[%c0_4, %c0_5, %c0_6] : memref<2x8x256xf32, #tpu.memory_space<vmem>>, vector<1x8x256xf32>
    %5 = vector.shape_cast %4 : vector<1x8x256xf32> to vector<8x256xf32>
    %6 = vector.shape_cast %3 : vector<8x256xf32> to vector<1x8x256xf32>
    tpu.vector_store %arg3[%c0_4, %c0_5, %c0_6], %6 {strides = array<i32>} : memref<2x8x256xf32, #tpu.memory_space<vmem>>, vector<1x8x256xf32>,
    %c1 = arith.constant 1 : index
    %c0_7 = arith.constant 0 : index
    %c0_8 = arith.constant 0 : index
    %7 = vector.load %arg1[%c1, %c0_7, %c0_8] : memref<2x36x256xf32, #tpu.memory_space<vmem>>, vector<1x36x256xf32>
    %8 = vector.shape_cast %7 : vector<1x36x256xf32> to vector<36x256xf32>
    %cst_9 = arith.constant dense<0.000000e+00> : vector<8x256xf32>
    %9 = tpu.matmul %0, %8, %cst_9 {dimension_numbers = #tpu.dot_dimension_numbers<[1], [0], [0], [1], [0, 0, 1, 1], [], []>} : vector<8x36xf32>, vector<36x256xf32>, vector<8x256xf32> -> vector<8x256xf32>
    %c1_10 = arith.constant 1 : index
    %c0_11 = arith.constant 0 : index
    %c0_12 = arith.constant 0 : index
    %10 = vector.load %arg3[%c1_10, %c0_11, %c0_12] : memref<2x8x256xf32, #tpu.memory_space<vmem>>, vector<1x8x256xf32>
    %11 = vector.shape_cast %10 : vector<1x8x256xf32> to vector<8x256xf32>
    %12 = vector.shape_cast %9 : vector<8x256xf32> to vector<1x8x256xf32>
    tpu.vector_store %arg3[%c1_10, %c0_11, %c0_12], %12 {strides = array<i32>} : memref<2x8x256xf32, #tpu.memory_space<vmem>>, vector<1x8x256xf32>,
    return
  }
  func.func @transform_0(%arg0: i32) -> (i32, i32, i32) {
    %c0_i32 = arith.constant 0 : i32
    %c0_i32_0 = arith.constant 0 : i32
    %c0_i32_1 = arith.constant 0 : i32
    return %c0_i32, %c0_i32_0, %arg0 : i32, i32, i32
  }
  func.func @transform_1(%arg0: i32) -> (i32, i32) {
    %c0_i32 = arith.constant 0 : i32
    %c0_i32_0 = arith.constant 0 : i32
    %c0_i32_1 = arith.constant 0 : i32
    return %c0_i32, %c0_i32_0 : i32, i32
  }
  func.func @transform_2(%arg0: i32) -> (i32, i32, i32) {
    %c0_i32 = arith.constant 0 : i32
    %c0_i32_0 = arith.constant 0 : i32
    %c0_i32_1 = arith.constant 0 : i32
    return %c0_i32, %c0_i32_0, %arg0 : i32, i32, i32
  }
}

</mosaic_0001>

<llo_original>
// kernel: tpu_custom_call.1
$region0: #{tpu_custom_call.1}
  #allocation0 [shape = 'u32[]', space=smem, size = 0x4, offset = 0x4, fixed_abs, tag = 'smem constant byte address 0x4 - core index']
  #allocation1 [shape = 'u32[144,128]{1,0:T(1,128)}', space=vmem, size = 0x12000, scoped, tag = 'internal scratch']
  %s0 = inlined_call_operand.vmem [shape: f32[2,36,256], index: 0, kind: input, shape index: {}]
  %s1 = inlined_call_operand.vmem [shape: f32[8,36], index: 1, kind: input, shape index: {}]
  %s2 = inlined_call_operand.hbm [shape: f32[2,8,256], index: 2, kind: output, shape index: {}]
  %s3 = sld [smem:[#allocation0]]
  $region18: #{tpu_custom_call.1} parent=0
    _
  %s5 = ssub.s32 1, %s3
  %s6 = scalar_select 0, %s5, %s3
  $region1: #{tpu_custom_call.1} parent=0
    #allocation2 [shape = 'u8[16384]{0}', space=vmem, size = 0x4000, scoped, tag = 'output window, operand 0, single buffered']
    #allocation3 [shape = 's32[1]{0}', space=sflag, size = 0x4, scoped, tag = 'scoped memory for tpu_custom_call.1']
    %7 = vsyncpa [#allocation3], 0
    // Predicated region
    $region2: #{tpu_custom_call.1} parent=1 // pred_check
      _
    $region3: #{tpu_custom_call.1} parent=1 // pred_check_branch
      %9 = sbr.rel (0) target = $region5
    $region4: #{tpu_custom_call.1} parent=1 // pred_region
      _
    $region5: #{tpu_custom_call.1} parent=1 // pred_fallthru
      _
    // Predicated region
    $region6: #{tpu_custom_call.1} parent=1 // pred_check
      _
    $region7: #{tpu_custom_call.1} parent=1 // pred_check_branch
      %11 = sbr.rel (0) target = $region9
    $region8: #{tpu_custom_call.1} parent=1 // pred_region
      _
    $region9: #{tpu_custom_call.1} parent=1 // pred_fallthru
      _
    %v12 = vld [vmem:[%s1] sm:$0xff]
    %v13 = vld [vmem:[%s0] sm:$0xff]
    %v14 = vld [vmem:[%s0 + $0x8] sm:$0xff]
    %v15 = vld [vmem:[%s0 + $0x10] sm:$0xff]
    %v16 = vld [vmem:[%s0 + $0x18] sm:$0xff]
    %v17 = vld [vmem:[%s0 + $0x20] sm:$0xff]
    %v18 = vld [vmem:[%s0 + $0x28] sm:$0xff]
    %v19 = vld [vmem:[%s0 + $0x30] sm:$0xff]
    %v20 = vld [vmem:[%s0 + $0x38] sm:$0xff]
    %v21 = vld [vmem:[%s0 + $0x40] sm:$0xf]
    %v22 = vld [vmem:[%s0 + $0x48] sm:$0xf]
    %vm23 = vcmask 293888
    %v25 = vsel %vm23, %v12, 0
    %vm27 = vcmask 1043456
    %v29 = vsel %vm27, %v21, 0
    %v32 = vsel %vm27, %v22, 0
    %34 = vmatprep.subr.mxu0 %v14
    %35 = vmatpush1.msra.mxu0 %v13
    %36 = vmatprep.subr.mxu0 %v16
    %37 = vmatpush1.msra.mxu0 %v15
    %38 = vmatprep.subr.mxu0 %v18
    %39 = vmatpush1.msra.mxu0 %v17
    %40 = vmatprep.subr.mxu0 %v20
    %41 = vmatpush1.msra.mxu0 %v19
    %42 = vmatprep.subr.mxu0 %v32
    %43 = vmatpush1.msra.mxu0 %v29
    %44 = vmatprep.subr.mxu0 0.0
    %45 = vmatpush1.msra.mxu0 0.0
    %46 = vmatprep.subr.mxu0 0.0
    %47 = vmatpush1.msra.mxu0 0.0
    %48 = vmatprep.subr.mxu0 0.0
    %49 = vmatpush1.msra.mxu0 0.0
    %50 = vmatprep.subr.mxu0 0.0
    %51 = vmatpush1.msra.mxu0 0.0
    %52 = vmatprep.subr.mxu0 0.0
    %53 = vmatpush1.msra.mxu0 0.0
    %54 = vmatprep.subr.mxu0 0.0
    %55 = vmatpush1.msra.mxu0 0.0
    %56 = vmatprep.subr.mxu0 0.0
    %57 = vmatpush1.msra.mxu0 0.0
    %58 = vmatprep.subr.mxu0 0.0
    %59 = vmatpush1.msra.mxu0 0.0
    %60 = vmatprep.subr.mxu0 0.0
    %61 = vmatpush1.msra.mxu0 0.0
    %62 = vmatprep.subr.mxu0 0.0
    %63 = vmatpush1.msra.mxu0 0.0
    %64 = vmatprep.subr.mxu0 0.0
    %65 = vmatpush1.msra.mxu0 0.0
    %66 = vmatprep.subr.mxu0 0.0
    %67 = vmatpush1.msra.mxu0 0.0
    %68 = vmatprep.subr.mxu0 0.0
    %69 = vmatpush1.msra.mxu0 0.0
    %70 = vmatprep.subr.mxu0 0.0
    %71 = vmatpush1.msra.mxu0 0.0
    %72 = vmatprep.subr.mxu0 0.0
    %73 = vmatpush1.msra.mxu0 0.0
    %74 = vmatprep.subr.mxu0 0.0
    %75 = vmatpush1.msra.mxu0 0.0
    %76 = vmatprep.subr.mxu0 0.0
    %77 = vmatpush1.msra.mxu0 0.0
    %78 = vmatprep.subr.mxu0 0.0
    %79 = vmatpush1.msra.mxu0 0.0
    %80 = vmatprep.subr.mxu0 0.0
    %81 = vmatpush1.msra.mxu0 0.0
    %82 = vmatprep.subr.mxu0 0.0
    %83 = vmatpush1.msra.mxu0 0.0
    %84 = vmatprep.subr.mxu0 0.0
    %85 = vmatpush1.msra.mxu0 0.0
    %86 = vmatprep.subr.mxu0 0.0
    %87 = vmatpush1.msra.mxu0 0.0
    %88 = vmatprep.subr.mxu0 0.0
    %89 = vmatpush1.msra.mxu0 0.0
    %90 = vmatprep.subr.mxu0 0.0
    %91 = vmatpush1.msra.mxu0 0.0
    %92 = vmatprep.subr.mxu0 0.0
    %93 = vmatpush1.msra.mxu0 0.0
    %94 = vmatprep.subr.mxu0 0.0
    %95 = vmatpush1.msra.mxu0 0.0
    %96 = vmatprep.subr.mxu0 0.0
    %97 = vmatpush1.msra.mxu0 0.0
    %98 = vmatprep.mubr.f32.mxu0 0.0
    %99 = vmatmul.mubr.f32.gmra.mrb[0].mxu0 %v25
    %v100 = vpop.f32.mrb[0].mxu0
    %v101 = vadd.f32 0.0, %v100
    %v102 = vpop.f32.mrb[0].mxu0
    %v103 = vadd.f32 0.0, %v102
    %104 = vdwg.mxu0
    %105 = vst [vmem:[#allocation2] sm:$0xff] %v101
    %106 = vst [vmem:[#allocation2 + $0x8] sm:$0xff] %v103
    %s107 = scalar_lea.vmem %s0, 80
    %v108 = vld [vmem:[%s107] sm:$0xff]
    %v109 = vld [vmem:[%s107 + $0x8] sm:$0xff]
    %v110 = vld [vmem:[%s107 + $0x10] sm:$0xff]
    %v111 = vld [vmem:[%s107 + $0x18] sm:$0xff]
    %v112 = vld [vmem:[%s107 + $0x20] sm:$0xff]
    %v113 = vld [vmem:[%s107 + $0x28] sm:$0xff]
    %v114 = vld [vmem:[%s107 + $0x30] sm:$0xff]
    %v115 = vld [vmem:[%s107 + $0x38] sm:$0xff]
    %v116 = vld [vmem:[%s107 + $0x40] sm:$0xf]
    %v117 = vld [vmem:[%s107 + $0x48] sm:$0xf]
    %v119 = vsel %vm27, %v116, 0
    %v122 = vsel %vm27, %v117, 0
    %124 = vmatprep.subr.mxu0 %v109
    %125 = vmatpush1.msra.mxu0 %v108
    %126 = vmatprep.subr.mxu0 %v111
    %127 = vmatpush1.msra.mxu0 %v110
    %128 = vmatprep.subr.mxu0 %v113
    %129 = vmatpush1.msra.mxu0 %v112
    %130 = vmatprep.subr.mxu0 %v115
    %131 = vmatpush1.msra.mxu0 %v114
    %132 = vmatprep.subr.mxu0 %v122
    %133 = vmatpush1.msra.mxu0 %v119
    %134 = vmatprep.subr.mxu0 0.0
    %135 = vmatpush1.msra.mxu0 0.0
    %136 = vmatprep.subr.mxu0 0.0
    %137 = vmatpush1.msra.mxu0 0.0
    %138 = vmatprep.subr.mxu0 0.0
    %139 = vmatpush1.msra.mxu0 0.0
    %140 = vmatprep.subr.mxu0 0.0
    %141 = vmatpush1.msra.mxu0 0.0
    %142 = vmatprep.subr.mxu0 0.0
    %143 = vmatpush1.msra.mxu0 0.0
    %144 = vmatprep.subr.mxu0 0.0
    %145 = vmatpush1.msra.mxu0 0.0
    %146 = vmatprep.subr.mxu0 0.0
    %147 = vmatpush1.msra.mxu0 0.0
    %148 = vmatprep.subr.mxu0 0.0
    %149 = vmatpush1.msra.mxu0 0.0
    %150 = vmatprep.subr.mxu0 0.0
    %151 = vmatpush1.msra.mxu0 0.0
    %152 = vmatprep.subr.mxu0 0.0
    %153 = vmatpush1.msra.mxu0 0.0
    %154 = vmatprep.subr.mxu0 0.0
    %155 = vmatpush1.msra.mxu0 0.0
    %156 = vmatprep.subr.mxu0 0.0
    %157 = vmatpush1.msra.mxu0 0.0
    %158 = vmatprep.subr.mxu0 0.0
    %159 = vmatpush1.msra.mxu0 0.0
    %160 = vmatprep.subr.mxu0 0.0
    %161 = vmatpush1.msra.mxu0 0.0
    %162 = vmatprep.subr.mxu0 0.0
    %163 = vmatpush1.msra.mxu0 0.0
    %164 = vmatprep.subr.mxu0 0.0
    %165 = vmatpush1.msra.mxu0 0.0
    %166 = vmatprep.subr.mxu0 0.0
    %167 = vmatpush1.msra.mxu0 0.0
    %168 = vmatprep.subr.mxu0 0.0
    %169 = vmatpush1.msra.mxu0 0.0
    %170 = vmatprep.subr.mxu0 0.0
    %171 = vmatpush1.msra.mxu0 0.0
    %172 = vmatprep.subr.mxu0 0.0
    %173 = vmatpush1.msra.mxu0 0.0
    %174 = vmatprep.subr.mxu0 0.0
    %175 = vmatpush1.msra.mxu0 0.0
    %176 = vmatprep.subr.mxu0 0.0
    %177 = vmatpush1.msra.mxu0 0.0
    %178 = vmatprep.subr.mxu0 0.0
    %179 = vmatpush1.msra.mxu0 0.0
    %180 = vmatprep.subr.mxu0 0.0
    %181 = vmatpush1.msra.mxu0 0.0
    %182 = vmatprep.subr.mxu0 0.0
    %183 = vmatpush1.msra.mxu0 0.0
    %184 = vmatprep.subr.mxu0 0.0
    %185 = vmatpush1.msra.mxu0 0.0
    %186 = vmatprep.subr.mxu0 0.0
    %187 = vmatpush1.msra.mxu0 0.0
    %188 = vmatprep.mubr.f32.mxu0 0.0
    %189 = vmatmul.mubr.f32.gmra.mrb[0].mxu0 %v25
    %v190 = vpop.f32.mrb[0].mxu0
    %v191 = vadd.f32 0.0, %v190
    %v192 = vpop.f32.mrb[0].mxu0
    %v193 = vadd.f32 0.0, %v192
    %194 = vdwg.mxu0
    %s195 = scalar_lea.vmem [#allocation2], 16
    %196 = vst [vmem:[%s195] sm:$0xff] %v191
    %197 = vst [vmem:[%s195 + $0x8] sm:$0xff] %v193
    // Predicated region
    $region10: #{tpu_custom_call.1} parent=1 // pred_check
      _
    $region11: #{tpu_custom_call.1} parent=1 // pred_check_branch
      %199 = sbr.rel (0) target = $region13
    $region12: #{tpu_custom_call.1} parent=1 // pred_region
      %s201 = ssub.s32 512, 512
      %202 = vsyncadd [#allocation3], %s201
      %s203 = sshll.u32 [#allocation2], 4
      %s204 = int_to_ptr.vmem [resolvable:$true] %s203
      %209 = dma.vmem_to_hbm [thread:$0]  %s204, 512, %s2, [#allocation3], 256, 256, 16
    $region13: #{tpu_custom_call.1} parent=1 // pred_fallthru
      _
    // Predicated region
    $region14: #{tpu_custom_call.1} parent=1 // pred_check
      _
    $region15: #{tpu_custom_call.1} parent=1 // pred_check_branch
      %211 = sbr.rel (0) target = $region17
    $region16: #{tpu_custom_call.1} parent=1 // pred_region
      %212 = dma.done [#allocation3], 512
    $region17: #{tpu_custom_call.1} parent=1 // pred_fallthru
      _
    %213 = vsyncpa [#allocation3], 1

</llo_original>
